<compile_context>
chip_gen: v5e
topology: v5e:2x2
jax: 0.10.0
libtpu: 0.0.40
codegen_flags: <defaults>
</compile_context>

<pallas_src>
import functools
import math

import jax
import jax.numpy as jnp
from jax.experimental import pallas as pl
from jax.experimental.pallas import tpu as pltpu


NEG_INF = -1e30


# ----------------------------- kernel helpers -----------------------------

def _layernorm(h, w, b, eps=1e-5):
    mu = jnp.mean(h, axis=-1, keepdims=True)
    var = jnp.mean((h - mu) ** 2, axis=-1, keepdims=True)
    return (h - mu) * jax.lax.rsqrt(var + eps) * w + b


def _gelu_exact(x):
    # nn.GELU() default = exact (erf-based) GELU
    return 0.5 * x * (1.0 + jax.lax.erf(x * (1.0 / math.sqrt(2.0))))


# ----------------------- pass 1: ln_1 + K/V projection ----------------------

def kv_proj_kernel(x_ref, ln1_w_ref, ln1_b_ref, w_kv_ref, b_kv_ref,
                   k_out_ref, v_out_ref):
    x = x_ref[...].astype(jnp.float32)                       # (TQ, C)
    C = x.shape[-1]
    h = _layernorm(x, ln1_w_ref[0], ln1_b_ref[0])
    h_c = h.astype(w_kv_ref.dtype)                           # bf16 MXU inputs
    # Single fused K|V projection: (TQ, C) @ (C, 2C).
    kv = jnp.dot(h_c, w_kv_ref[...], preferred_element_type=jnp.float32) + b_kv_ref[0]
    k_out_ref[...] = kv[:, :C].astype(k_out_ref.dtype)
    v_out_ref[...] = kv[:, C:].astype(v_out_ref.dtype)


# ------------- pass 2: flash attention + proj + residual + MLP -------------

def attn_mlp_kernel(x_ref, k_ref, v_ref,
                    ln1_w_ref, ln1_b_ref, w_q_ref, b_q_ref,
                    w_proj_ref, b_proj_ref,
                    ln2_w_ref, ln2_b_ref,
                    w_fc_ref, b_fc_ref, w_fcproj_ref, b_fcproj_ref,
                    o_ref,
                    m_scr, l_scr, acc_scr,
                    *, n_head, tk):
    f32 = jnp.float32
    x = x_ref[...].astype(f32)                               # (TQ, C) f32 residual
    tq, C = x.shape
    H = n_head
    dh = C // H
    cd = k_ref.dtype                                         # compute dtype (bf16)
    qi = pl.program_id(1)

    # ---- ln_1 + Q projection for this query tile; fold 1/sqrt(dh) into q ----
    h1 = _layernorm(x, ln1_w_ref[0], ln1_b_ref[0])
    q = jnp.dot(h1.astype(cd), w_q_ref[...], preferred_element_type=f32) + b_q_ref[0]
    q = (q * (1.0 / math.sqrt(dh))).astype(cd)               # (TQ, C) bf16

    # Per-head q slices hoisted out of the K/V loop (paid H times, not H*n_kv).
    q_heads = [q[:, h * dh:(h + 1) * dh] for h in range(H)]

    # Causal mask for the diagonal K/V tile (local indices valid since TK == TQ).
    row = jax.lax.broadcasted_iota(jnp.int32, (tq, tk), 0)
    col = jax.lax.broadcasted_iota(jnp.int32, (tq, tk), 1)
    diag_mask = col <= row

    # Online-softmax state lives in VMEM scratch (no big fori_loop carry).
    m_scr[...] = jnp.full(m_scr.shape, NEG_INF, f32)         # (TQ, H)
    l_scr[...] = jnp.zeros(l_scr.shape, f32)                 # (TQ, H)
    acc_scr[...] = jnp.zeros(acc_scr.shape, f32)             # (TQ, C)

    def kv_step(kt, masked):
        start = pl.multiple_of(kt * tk, tk)
        k_t = k_ref[pl.ds(start, tk), :]                     # (TK, C) lane-dense load
        v_t = v_ref[pl.ds(start, tk), :]
        m_prev = m_scr[...]
        l_prev = l_scr[...]
        acc_prev = acc_scr[...]
        m_parts, l_parts, acc_parts = [], [], []
        for h in range(H):                                   # static unroll over heads
            m_h = m_prev[:, h:h + 1]
            l_h = l_prev[:, h:h + 1]
            acc_h = acc_prev[:, h * dh:(h + 1) * dh]
            k_h = k_t[:, h * dh:(h + 1) * dh]
            v_h = v_t[:, h * dh:(h + 1) * dh]
            # q @ k^T without an explicit transpose (contract the dh dims).
            s = jax.lax.dot_general(q_heads[h], k_h, (((1,), (1,)), ((), ())),
                                    preferred_element_type=f32)   # (TQ, TK)
            if masked:
                s = jnp.where(diag_mask, s, NEG_INF)
            # online softmax update
            m_new = jnp.maximum(m_h, jnp.max(s, axis=-1, keepdims=True))
            p = jnp.exp(s - m_new)
            alpha = jnp.exp(m_h - m_new)
            l_new = alpha * l_h + jnp.sum(p, axis=-1, keepdims=True)
            acc_new = alpha * acc_h + jnp.dot(p.astype(cd), v_h,
                                              preferred_element_type=f32)
            m_parts.append(m_new)
            l_parts.append(l_new)
            acc_parts.append(acc_new)
        # Full-slab writes (pure lane placement, no per-head masked stores).
        m_scr[...] = jnp.concatenate(m_parts, axis=-1)
        l_scr[...] = jnp.concatenate(l_parts, axis=-1)
        acc_scr[...] = jnp.concatenate(acc_parts, axis=-1)

    # Fully-unmasked K/V tiles strictly below the diagonal, then the diagonal tile.
    # TODO(synk): for very long T, stream (TK,C) K/V tiles from HBM manually
    # (memory_space=pl.ANY + make_async_copy) instead of full-row residency.
    @pl.loop(0, qi)
    def _(kt):
        kv_step(kt, False)

    kv_step(qi, True)

    # ---- softmax normalization + ONE (TQ,C)@(C,C) output projection ----
    inv_l = pl.reciprocal(l_scr[...], approx=True)           # (TQ, H), EUP slot
    acc = acc_scr[...]
    y = jnp.concatenate(
        [(acc[:, h * dh:(h + 1) * dh] * inv_l[:, h:h + 1]).astype(cd)
         for h in range(H)], axis=-1)                        # (TQ, C) bf16
    attn_out = jnp.dot(y, w_proj_ref[...], preferred_element_type=f32) + b_proj_ref[0]
    x1 = x + attn_out                                        # first residual (f32)

    # ---- ln_2 + MLP (only a (TQ, 4C) intermediate, never (T, 4C)) ----
    h2 = _layernorm(x1, ln2_w_ref[0], ln2_b_ref[0])
    fc = jnp.dot(h2.astype(cd), w_fc_ref[...], preferred_element_type=f32) + b_fc_ref[0]
    fc = _gelu_exact(fc)
    mlp = jnp.dot(fc.astype(cd), w_fcproj_ref[...],
                  preferred_element_type=f32) + b_fcproj_ref[0]

    o_ref[...] = (x1 + mlp).astype(o_ref.dtype)


# ------------------------------- the wrapper -------------------------------

def transformer_block(x, params, n_head, *, compute_dtype=jnp.bfloat16,
                      q_tile=128, vmem_limit_bytes=48 * 1024 * 1024):
    """Fused nanoGPT Block forward.

    Tuning notes:
      * v5e:   q_tile=128 (native 4x128x128 MXU), vmem_limit up to ~100 MiB.
      * v6e:   q_tile=256 + vmem_limit ~96-110 MiB to fill the 2x256x256 MXU.
      * v7x:   q_tile=256 only with the single-buffered constants (default
               here); keep vmem_limit <= ~48-56 MiB of its 64 MiB/TC.
    """
    B, T, C = x.shape
    (ln1_w, ln1_b, w_attn, b_attn, w_proj, b_proj,
     ln2_w, ln2_b, w_fc, b_fc, w_fcproj, b_fcproj) = params
    assert C % n_head == 0

    # Tile-size selection: fail loudly instead of silently using a (T,T) tile.
    if T % q_tile == 0:
        tq = q_tile
    elif T < q_tile:
        tq = T
    else:
        raise ValueError(
            f"T={T} must be a multiple of q_tile={q_tile}; pad T or pick a divisor.")
    tk = tq
    n_q = T // tq
    cd = compute_dtype

    # Split c_attn into Q and fused K|V parts (host side, free) and cast the
    # matmul weights to the compute dtype (halves weight DMA + VMEM residency).
    w_q = w_attn[:, :C].astype(cd)
    w_kv = w_attn[:, C:].astype(cd)          # (C, 2C): K columns then V columns
    b_q = b_attn[:, :C]
    b_kv = b_attn[:, C:]
    w_proj_c = w_proj.astype(cd)
    w_fc_c = w_fc.astype(cd)
    w_fcproj_c = w_fcproj.astype(cd)
    # TODO(synk): for C >= 1024 on v7x, stream w_fc/w_fcproj in 4C-chunks
    # (emit_pipeline or an extra grid axis) instead of full VMEM residency.

    def const2d(a):
        # Whole (small) parameter resident, same block every grid step:
        # single-buffer it (Buffered(1)) -> no wasted second VMEM copy.
        return pl.BlockSpec(a.shape, lambda b, i: (0, 0),
                            pipeline_mode=pl.Buffered(1))

    cparams = pltpu.CompilerParams(
        dimension_semantics=("parallel", "parallel"),
        vmem_limit_bytes=vmem_limit_bytes)

    # ---------------- pass 1: ln_1 + fused K|V projection ----------------
    k_full, v_full = pl.pallas_call(
        kv_proj_kernel,
        out_shape=(jax.ShapeDtypeStruct((B, T, C), cd),
                   jax.ShapeDtypeStruct((B, T, C), cd)),
        grid_spec=pltpu.PrefetchScalarGridSpec(
            num_scalar_prefetch=0,
            grid=(B, n_q),
            in_specs=[
                pl.BlockSpec((None, tq, C), lambda b, i: (b, i, 0)),   # x tile
                const2d(ln1_w), const2d(ln1_b),
                const2d(w_kv), const2d(b_kv),
            ],
            out_specs=[pl.BlockSpec((None, tq, C), lambda b, i: (b, i, 0)),
                       pl.BlockSpec((None, tq, C), lambda b, i: (b, i, 0))],
        ),
        compiler_params=cparams,
    )(x, ln1_w, ln1_b, w_kv, b_kv)

    # ------- pass 2: flash-style causal attention + residual + MLP -------
    kernel = functools.partial(attn_mlp_kernel, n_head=n_head, tk=tk)
    out = pl.pallas_call(
        kernel,
        out_shape=jax.ShapeDtypeStruct((B, T, C), x.dtype),
        grid_spec=pltpu.PrefetchScalarGridSpec(
            num_scalar_prefetch=0,
            grid=(B, n_q),
            in_specs=[
                pl.BlockSpec((None, tq, C), lambda b, i: (b, i, 0)),   # x (q tile)
                # K/V full row: index doesn't change across i -> single buffer.
                pl.BlockSpec((None, T, C), lambda b, i: (b, 0, 0),
                             pipeline_mode=pl.Buffered(1)),
                pl.BlockSpec((None, T, C), lambda b, i: (b, 0, 0),
                             pipeline_mode=pl.Buffered(1)),
                const2d(ln1_w), const2d(ln1_b),
                const2d(w_q), const2d(b_q),
                const2d(w_proj_c), const2d(b_proj),
                const2d(ln2_w), const2d(ln2_b),
                const2d(w_fc_c), const2d(b_fc),
                const2d(w_fcproj_c), const2d(b_fcproj),
            ],
            out_specs=pl.BlockSpec((None, tq, C), lambda b, i: (b, i, 0)),
            scratch_shapes=[
                pltpu.VMEM((tq, n_head), jnp.float32),   # m (running max)
                pltpu.VMEM((tq, n_head), jnp.float32),   # l (running denom)
                pltpu.VMEM((tq, C), jnp.float32),        # acc (unnormalized out)
            ],
        ),
        compiler_params=cparams,
    )(x, k_full, v_full, ln1_w, ln1_b, w_q, b_q, w_proj_c, b_proj,
      ln2_w, ln2_b, w_fc_c, b_fc, w_fcproj_c, b_fcproj)
    return out


# --------------------------- pure-JAX reference ---------------------------

def reference_block(x, params, n_head, compute_dtype=jnp.float32):
    (ln1_w, ln1_b, w_attn, b_attn, w_proj, b_proj,
     ln2_w, ln2_b, w_fc, b_fc, w_fcproj, b_fcproj) = params
    B, T, C = x.shape
    H = n_head
    dh = C // H
    cd = compute_dtype
    f32 = jnp.float32

    def ln(h, w, b):
        mu = jnp.mean(h, -1, keepdims=True)
        var = jnp.mean((h - mu) ** 2, -1, keepdims=True)
        return (h - mu) * jax.lax.rsqrt(var + 1e-5) * w[0] + b[0]

    def mm(a, w):
        return jnp.einsum("btc,cd->btd", a.astype(cd), w.astype(cd),
                          preferred_element_type=f32)

    h = ln(x, ln1_w, ln1_b)
    qkv = mm(h, w_attn) + b_attn[0]
    q, k, v = jnp.split(qkv, 3, axis=-1)
    q = q * (1.0 / math.sqrt(dh))
    qh = q.reshape(B, T, H, dh).transpose(0, 2, 1, 3).astype(cd)
    kh = k.reshape(B, T, H, dh).transpose(0, 2, 1, 3).astype(cd)
    vh = v.reshape(B, T, H, dh).transpose(0, 2, 1, 3).astype(cd)
    att = jnp.einsum("bhqd,bhkd->bhqk", qh, kh, preferred_element_type=f32)
    mask = jnp.tril(jnp.ones((T, T), bool))
    att = jnp.where(mask[None, None], att, NEG_INF)
    att = jax.nn.softmax(att, axis=-1)
    y = jnp.einsum("bhqk,bhkd->bhqd", att.astype(cd), vh,
                   preferred_element_type=f32)
    y = y.transpose(0, 2, 1, 3).reshape(B, T, C)
    x1 = x + mm(y, w_proj) + b_proj[0]

    h2 = ln(x1, ln2_w, ln2_b)
    fc = mm(h2, w_fc) + b_fc[0]
    fc = 0.5 * fc * (1.0 + jax.lax.erf(fc * (1.0 / math.sqrt(2.0))))
    return x1 + mm(fc, w_fcproj) + b_fcproj[0]


# ---------------------------------- main ----------------------------------

if __name__ == "__main__":
    B, T, C, n_head = 2, 16, 32, 4          # small; T=16 + q_tile=8 exercises tiling

    key = jax.random.PRNGKey(0)
    keys = jax.random.split(key, 12)

    ln1_w = 1.0 + 0.1 * jax.random.normal(keys[5], (1, C), jnp.float32)
    ln1_b = 0.1 * jax.random.normal(keys[6], (1, C), jnp.float32)
    ln2_w = 1.0 + 0.1 * jax.random.normal(keys[7], (1, C), jnp.float32)
    ln2_b = 0.1 * jax.random.normal(keys[8], (1, C), jnp.float32)
    w_attn = 0.02 * jax.random.normal(keys[0], (C, 3 * C), jnp.float32)
    b_attn = 0.02 * jax.random.normal(keys[9], (1, 3 * C), jnp.float32)
    w_proj = 0.02 * jax.random.normal(keys[1], (C, C), jnp.float32)
    b_proj = 0.02 * jax.random.normal(keys[10], (1, C), jnp.float32)
    w_fc = 0.02 * jax.random.normal(keys[2], (C, 4 * C), jnp.float32)
    b_fc = 0.02 * jax.random.normal(keys[11], (1, 4 * C), jnp.float32)
    w_fcproj = 0.02 * jax.random.normal(keys[3], (4 * C, C), jnp.float32)
    b_fcproj = jnp.zeros((1, C), jnp.float32)

    params = (ln1_w, ln1_b, w_attn, b_attn, w_proj, b_proj,
              ln2_w, ln2_b, w_fc, b_fc, w_fcproj, b_fcproj)

    x = jax.random.normal(keys[4], (B, T, C), jnp.float32)

    out = transformer_block(x, params, n_head, q_tile=8)   # bf16 compute path
    out = jax.block_until_ready(out)
    assert out.shape == (B, T, C)

    # Matched reference (same bf16-in / f32-accumulate numerics) -> tight check.
    ref_bf16 = reference_block(x, params, n_head, compute_dtype=jnp.bfloat16)
    err_m = float(jnp.max(jnp.abs(out - ref_bf16)))
    assert jnp.allclose(out, ref_bf16, atol=3e-3, rtol=3e-3), (
        f"bf16-matched max abs err = {err_m}")

    # Full-f32 reference -> semantic sanity at bf16-appropriate tolerance.
    ref_f32 = reference_block(x, params, n_head, compute_dtype=jnp.float32)
    err_f = float(jnp.max(jnp.abs(out - ref_f32)))
    assert jnp.allclose(out, ref_f32, atol=8e-3, rtol=8e-3), (
        f"f32-reference max abs err = {err_f}")

    print("KERNEL_OK")
</pallas_src>

<mosaic_0001>
module attributes {stable_mosaic.version = 11 : i64} {
  func.func @kv_proj_kernel(%arg0: i32, %arg1: i32, %arg2: memref<1x8x32xf32, #tpu.memory_space<vmem>>, %arg3: memref<1x32xf32, #tpu.memory_space<vmem>>, %arg4: memref<1x32xf32, #tpu.memory_space<vmem>>, %arg5: memref<32x64xbf16, #tpu.memory_space<vmem>>, %arg6: memref<1x64xf32, #tpu.memory_space<vmem>>, %arg7: memref<1x8x32xbf16, #tpu.memory_space<vmem>>, %arg8: memref<1x8x32xbf16, #tpu.memory_space<vmem>>) attributes {dimension_semantics = [#tpu.dimension_semantics<parallel>, #tpu.dimension_semantics<parallel>], iteration_bounds = array<i64: 2, 2>, scalar_prefetch = 0 : i64, scratch_operands = 0 : i64, tpu.core_type = #tpu.core_type<tc>, window_params = [{transform_indices = @transform_0, window_bounds = array<i64: 1, 8, 32>}, {pipeline_mode = #tpu.pipeline_mode<synchronous>, transform_indices = @transform_1, window_bounds = array<i64: 1, 32>}, {pipeline_mode = #tpu.pipeline_mode<synchronous>, transform_indices = @transform_2, window_bounds = array<i64: 1, 32>}, {pipeline_mode = #tpu.pipeline_mode<synchronous>, transform_indices = @transform_3, window_bounds = array<i64: 32, 64>}, {pipeline_mode = #tpu.pipeline_mode<synchronous>, transform_indices = @transform_4, window_bounds = array<i64: 1, 64>}, {transform_indices = @transform_5, window_bounds = array<i64: 1, 8, 32>}, {transform_indices = @transform_6, window_bounds = array<i64: 1, 8, 32>}]} {
    %c0 = arith.constant 0 : index
    %c0_0 = arith.constant 0 : index
    %c0_1 = arith.constant 0 : index
    %0 = vector.load %arg2[%c0, %c0_0, %c0_1] : memref<1x8x32xf32, #tpu.memory_space<vmem>>, vector<1x8x32xf32>
    %1 = vector.shape_cast %0 : vector<1x8x32xf32> to vector<8x32xf32>
    %c0_2 = arith.constant 0 : index
    %c0_3 = arith.constant 0 : index
    %2 = vector.load %arg3[%c0_2, %c0_3] : memref<1x32xf32, #tpu.memory_space<vmem>>, vector<1x32xf32>
    %3 = vector.shape_cast %2 : vector<1x32xf32> to vector<32xf32>
    %c0_4 = arith.constant 0 : index
    %c0_5 = arith.constant 0 : index
    %4 = vector.load %arg4[%c0_4, %c0_5] : memref<1x32xf32, #tpu.memory_space<vmem>>, vector<1x32xf32>
    %5 = vector.shape_cast %4 : vector<1x32xf32> to vector<32xf32>
    %cst = arith.constant dense<0.000000e+00> : vector<8xf32>
    %6 = vector.multi_reduction <add>, %1, %cst [1] : vector<8x32xf32> to vector<8xf32>
    %7 = vector.shape_cast %6 : vector<8xf32> to vector<8x1xf32>
    %cst_6 = arith.constant 3.200000e+01 : f32
    %8 = vector.broadcast %cst_6 : f32 to vector<8x1xf32>
    %9 = arith.divf %7, %8 : vector<8x1xf32>
    %10 = vector.broadcast %9 : vector<8x1xf32> to vector<8x32xf32>
    %11 = arith.subf %1, %10 : vector<8x32xf32>
    %12 = arith.mulf %11, %11 : vector<8x32xf32>
    %cst_7 = arith.constant dense<0.000000e+00> : vector<8xf32>
    %13 = vector.multi_reduction <add>, %12, %cst_7 [1] : vector<8x32xf32> to vector<8xf32>
    %14 = vector.shape_cast %13 : vector<8xf32> to vector<8x1xf32>
    %cst_8 = arith.constant 3.200000e+01 : f32
    %15 = vector.broadcast %cst_8 : f32 to vector<8x1xf32>
    %16 = arith.divf %14, %15 : vector<8x1xf32>
    %17 = vector.broadcast %9 : vector<8x1xf32> to vector<8x32xf32>
    %18 = arith.subf %1, %17 : vector<8x32xf32>
    %cst_9 = arith.constant 9.99999974E-6 : f32
    %19 = vector.broadcast %cst_9 : f32 to vector<8x1xf32>
    %20 = arith.addf %16, %19 : vector<8x1xf32>
    %21 = math.rsqrt %20 : vector<8x1xf32>
    %22 = vector.broadcast %21 : vector<8x1xf32> to vector<8x32xf32>
    %23 = arith.mulf %18, %22 : vector<8x32xf32>
    %24 = vector.shape_cast %3 : vector<32xf32> to vector<1x32xf32>
    %25 = vector.broadcast %24 : vector<1x32xf32> to vector<8x32xf32>
    %26 = arith.mulf %23, %25 : vector<8x32xf32>
    %27 = vector.shape_cast %5 : vector<32xf32> to vector<1x32xf32>
    %28 = vector.broadcast %27 : vector<1x32xf32> to vector<8x32xf32>
    %29 = arith.addf %26, %28 : vector<8x32xf32>
    %30 = arith.truncf %29 : vector<8x32xf32> to vector<8x32xbf16>
    %c0_10 = arith.constant 0 : index
    %c0_11 = arith.constant 0 : index
    %31 = vector.load %arg5[%c0_10, %c0_11] : memref<32x64xbf16, #tpu.memory_space<vmem>>, vector<32x64xbf16>
    %cst_12 = arith.constant dense<0.000000e+00> : vector<8x64xf32>
    %32 = tpu.matmul %30, %31, %cst_12 {dimension_numbers = #tpu.dot_dimension_numbers<[1], [0], [0], [1], [0, 0, 1, 1], [], []>} : vector<8x32xbf16>, vector<32x64xbf16>, vector<8x64xf32> -> vector<8x64xf32>
    %c0_13 = arith.constant 0 : index
    %c0_14 = arith.constant 0 : index
    %33 = vector.load %arg6[%c0_13, %c0_14] : memref<1x64xf32, #tpu.memory_space<vmem>>, vector<1x64xf32>
    %34 = vector.shape_cast %33 : vector<1x64xf32> to vector<64xf32>
    %35 = vector.shape_cast %34 : vector<64xf32> to vector<1x64xf32>
    %36 = vector.broadcast %35 : vector<1x64xf32> to vector<8x64xf32>
    %37 = arith.addf %32, %36 : vector<8x64xf32>
    %38 = vector.extract_strided_slice %37 {offsets = [0, 0], sizes = [8, 32], strides = [1, 1]} : vector<8x64xf32> to vector<8x32xf32>
    %39 = arith.truncf %38 : vector<8x32xf32> to vector<8x32xbf16>
    %c0_15 = arith.constant 0 : index
    %c0_16 = arith.constant 0 : index
    %c0_17 = arith.constant 0 : index
    %40 = vector.load %arg7[%c0_15, %c0_16, %c0_17] : memref<1x8x32xbf16, #tpu.memory_space<vmem>>, vector<1x8x32xbf16>
    %41 = vector.shape_cast %40 : vector<1x8x32xbf16> to vector<8x32xbf16>
    %42 = vector.shape_cast %39 : vector<8x32xbf16> to vector<1x8x32xbf16>
    tpu.vector_store %arg7[%c0_15, %c0_16, %c0_17], %42 {strides = array<i32>} : memref<1x8x32xbf16, #tpu.memory_space<vmem>>, vector<1x8x32xbf16>,
    %43 = vector.extract_strided_slice %37 {offsets = [0, 32], sizes = [8, 32], strides = [1, 1]} : vector<8x64xf32> to vector<8x32xf32>
    %44 = arith.truncf %43 : vector<8x32xf32> to vector<8x32xbf16>
    %c0_18 = arith.constant 0 : index
    %c0_19 = arith.constant 0 : index
    %c0_20 = arith.constant 0 : index
    %45 = vector.load %arg8[%c0_18, %c0_19, %c0_20] : memref<1x8x32xbf16, #tpu.memory_space<vmem>>, vector<1x8x32xbf16>
    %46 = vector.shape_cast %45 : vector<1x8x32xbf16> to vector<8x32xbf16>
    %47 = vector.shape_cast %44 : vector<8x32xbf16> to vector<1x8x32xbf16>
    tpu.vector_store %arg8[%c0_18, %c0_19, %c0_20], %47 {strides = array<i32>} : memref<1x8x32xbf16, #tpu.memory_space<vmem>>, vector<1x8x32xbf16>,
    return
  }
  func.func @transform_0(%arg0: i32, %arg1: i32) -> (i32, i32, i32) {
    %c0_i32 = arith.constant 0 : i32
    %c0_i32_0 = arith.constant 0 : i32
    return %arg0, %arg1, %c0_i32 : i32, i32, i32
  }
  func.func @transform_1(%arg0: i32, %arg1: i32) -> (i32, i32) {
    %c0_i32 = arith.constant 0 : i32
    %c0_i32_0 = arith.constant 0 : i32
    %c0_i32_1 = arith.constant 0 : i32
    return %c0_i32, %c0_i32_0 : i32, i32
  }
  func.func @transform_2(%arg0: i32, %arg1: i32) -> (i32, i32) {
    %c0_i32 = arith.constant 0 : i32
    %c0_i32_0 = arith.constant 0 : i32
    %c0_i32_1 = arith.constant 0 : i32
    return %c0_i32, %c0_i32_0 : i32, i32
  }
  func.func @transform_3(%arg0: i32, %arg1: i32) -> (i32, i32) {
    %c0_i32 = arith.constant 0 : i32
    %c0_i32_0 = arith.constant 0 : i32
    %c0_i32_1 = arith.constant 0 : i32
    return %c0_i32, %c0_i32_0 : i32, i32
  }
  func.func @transform_4(%arg0: i32, %arg1: i32) -> (i32, i32) {
    %c0_i32 = arith.constant 0 : i32
    %c0_i32_0 = arith.constant 0 : i32
    %c0_i32_1 = arith.constant 0 : i32
    return %c0_i32, %c0_i32_0 : i32, i32
  }
  func.func @transform_5(%arg0: i32, %arg1: i32) -> (i32, i32, i32) {
    %c0_i32 = arith.constant 0 : i32
    %c0_i32_0 = arith.constant 0 : i32
    return %arg0, %arg1, %c0_i32 : i32, i32, i32
  }
  func.func @transform_6(%arg0: i32, %arg1: i32) -> (i32, i32, i32) {
    %c0_i32 = arith.constant 0 : i32
    %c0_i32_0 = arith.constant 0 : i32
    return %arg0, %arg1, %c0_i32 : i32, i32, i32
  }
}

</mosaic_0001>

<llo_original>
// kernel: tpu_custom_call.1
$region0: #{tpu_custom_call.1}
  #allocation0 [shape = 'u32[]', space=smem, size = 0x4, offset = 0x4, fixed_abs, tag = 'smem constant byte address 0x4 - core index']
  #allocation1 [shape = 'u32[72,128]{1,0:T(1,128)}', space=vmem, size = 0x9000, scoped, tag = 'internal scratch']
  %s0 = inlined_call_operand.hbm [shape: f32[2,16,32], index: 0, kind: input, shape index: {}]
  %s1 = inlined_call_operand.hbm [shape: f32[1,32], index: 1, kind: input, shape index: {}]
  %s2 = inlined_call_operand.vmem [shape: f32[1,32], index: 2, kind: input, shape index: {}]
  %s3 = inlined_call_operand.hbm [shape: bf16[32,64], index: 3, kind: input, shape index: {}]
  %s4 = inlined_call_operand.vmem [shape: f32[1,64], index: 4, kind: input, shape index: {}]
  %s5 = inlined_call_operand.hbm [shape: bf16[2,16,32], index: 5, kind: output, shape index: {0}]
  %s6 = inlined_call_operand.hbm [shape: bf16[2,16,32], index: 6, kind: output, shape index: {1}]
  %7 = xla_tuple %s5, %s6
  %s8 = sld [smem:[#allocation0]]
  $region73: #{tpu_custom_call.1} parent=0
    _
  %s10 = ssub.s32 1, %s8
  %s11 = scalar_select 0, %s10, %s8
  $region1: #{tpu_custom_call.1} parent=0
    #allocation2 [shape = 'u8[8192]{0}', space=vmem, size = 0x2000, scoped, tag = 'input window, operand 0']
    #allocation3 [shape = 's32[2]{0}', space=sflag, size = 0x8, scoped, tag = 'scoped memory for tpu_custom_call.1']
    #allocation4 [shape = 's32[2]{0}', space=sflag, size = 0x8, scoped, tag = 'scoped memory for tpu_custom_call.1']
    #allocation5 [shape = 'u8[512]{0}', space=vmem, size = 0x400, scoped, tag = 'input window, operand 1, single buffered']
    #allocation6 [shape = 's32[1]{0}', space=sflag, size = 0x4, scoped, tag = 'scoped memory for tpu_custom_call.1']
    #allocation7 [shape = 'u8[8192]{0}', space=vmem, size = 0x2000, scoped, tag = 'input window, operand 3, single buffered']
    #allocation8 [shape = 'u8[4096]{0}', space=vmem, size = 0x1000, scoped, tag = 'output window, operand 0']
    #allocation9 [shape = 'u8[4096]{0}', space=vmem, size = 0x1000, scoped, tag = 'output window, operand 1']
    #allocation10 [shape = 's32[2]{0}', space=sflag, size = 0x8, scoped, tag = 'scoped memory for tpu_custom_call.1']
    %12 = vsyncpa [#allocation3], 0
    %s13 = scalar_lea.sflag [#allocation3], 1
    %14 = vsyncpa %s13, 0
    %15 = vsyncpa [#allocation6], 0
    %16 = vsyncpa [#allocation4], 0
    %s17 = scalar_lea.sflag [#allocation4], 1
    %18 = vsyncpa %s17, 0
    %19 = vsyncpa [#allocation10], 0
    %s20 = scalar_lea.sflag [#allocation10], 1
    %21 = vsyncpa %s20, 0
    loop: start=0, step=1, limit=6
    $region2: #{tpu_custom_call.1} parent=1 // loop_pre_header
      _
    $region3: #{tpu_custom_call.1} parent=1 // loop_header
      %s23 = sphi 0, %s27
      %p24 = scmp.ge.s32.totalorder %s23, 6
      %s30 = sphi 0, %s42
      %s31 = sphi 0, %s38
      %s32 = sphi 0, %s30
      %s33 = sphi 0, %s31
      %s34 = sphi 0, %s32
      %s35 = sphi 0, %s33
      %s47 = sphi 0, %s49
      %s50 = sphi 0, %s47
      %s51 = sphi 0, %s50
      %s67 = sphi 0, %s51
      %s71 = sphi 0, %s71
      %s73 = sphi 0, %s71
      %s74 = sphi 0, %s73
      %s88 = sphi 0, %s74
      %s92 = sphi 0, %s92
      %s94 = sphi 0, %s92
      %s95 = sphi 0, %s94
      %s109 = sphi 0, %s95
      %s113 = sphi 0, %s113
      %s115 = sphi 0, %s113
      %s116 = sphi 0, %s115
      %s130 = sphi 0, %s116
      %s134 = sphi 0, %s134
      %s136 = sphi 0, %s134
      %s137 = sphi 0, %s136
      %s151 = sphi 0, %s137
      %s159 = sphi 0, %s161
      %s162 = sphi 0, %s159
      %s163 = sphi 0, %s162
      %s179 = sphi 0, %s163
      %s187 = sphi 0, %s189
      %s190 = sphi 0, %s187
      %s191 = sphi 0, %s190
      %s207 = sphi 0, %s191
    $region4: #{tpu_custom_call.1} parent=1 // loop_header_branch
      %26 = sbr.rel (%p24) target = $region8
    $region5: #{tpu_custom_call.1} parent=1 // loop_body
      %s28 = ssub.s32 %s23, 1
      %s29 = ssub.s32 %s23, 2
      %s36 = sadd.s32 1, %s31
      %p37 = scmp.ge.s32.totalorder %s36, 2
      %s38 = scalar_select %p37, 0, %s36
      %s39 = sadd.s32 1, %s30
      %s40 = scalar_select %p37, %s39, %s30
      %p41 = scmp.ge.s32.totalorder %s40, 2
      %s42 = scalar_select %p41, 0, %s40
      %s43 = ssub.s32 %s30, %s42
      %s44 = ssub.s32 %s31, %s38
      %s45 = sor.u32 %s43, %s44
      %p46 = scmp.eq.s32.totalorder %s45, 0
      %s48 = sadd.s32 %s47, 1
      %s49 = scalar_select %p46, %s47, %s48
      %p52 = pneg %p46
      %p53 = scmp.eq.s32.totalorder %s23, 3
      %p54 = por %p52, %p53
      %p55 = scmp.ne.s32.totalorder %s47, %s50
      %p56 = scmp.eq.s32.totalorder %s23, 0
      %p57 = por %p55, %p56
      %p58 = scmp.ne.s32.totalorder %s47, %s50
      %p59 = scmp.eq.s32.totalorder %s28, 3
      %p60 = por %p58, %p59
      %p61 = scmp.ne.s32.totalorder %s50, %s51
      %p62 = scmp.eq.s32.totalorder %s28, 0
      %p63 = por %p61, %p62
      %p64 = scmp.ne.s32.totalorder %s50, %s51
      %p65 = scmp.eq.s32.totalorder %s29, 3
      %p66 = por %p64, %p65
      %p68 = scmp.ne.s32.totalorder %s51, %s67
      %p69 = scmp.eq.s32.totalorder %s29, 0
      %p70 = por %p68, %p69
      %s72 = sadd.s32 %s71, 1
      %p75 = scmp.eq.s32.totalorder %s23, 3
      %p76 = scmp.ne.s32.totalorder %s71, %s73
      %p77 = scmp.eq.s32.totalorder %s23, 0
      %p78 = por %p76, %p77
      %p79 = scmp.ne.s32.totalorder %s71, %s73
      %p80 = scmp.eq.s32.totalorder %s28, 3
      %p81 = por %p79, %p80
      %p82 = scmp.ne.s32.totalorder %s73, %s74
      %p83 = scmp.eq.s32.totalorder %s28, 0
      %p84 = por %p82, %p83
      %p85 = scmp.ne.s32.totalorder %s73, %s74
      %p86 = scmp.eq.s32.totalorder %s29, 3
      %p87 = por %p85, %p86
      %p89 = scmp.ne.s32.totalorder %s74, %s88
      %p90 = scmp.eq.s32.totalorder %s29, 0
      %p91 = por %p89, %p90
      %s93 = sadd.s32 %s92, 1
      %p96 = scmp.eq.s32.totalorder %s23, 3
      %p97 = scmp.ne.s32.totalorder %s92, %s94
      %p98 = scmp.eq.s32.totalorder %s23, 0
      %p99 = por %p97, %p98
      %p100 = scmp.ne.s32.totalorder %s92, %s94
      %p101 = scmp.eq.s32.totalorder %s28, 3
      %p102 = por %p100, %p101
      %p103 = scmp.ne.s32.totalorder %s94, %s95
      %p104 = scmp.eq.s32.totalorder %s28, 0
      %p105 = por %p103, %p104
      %p106 = scmp.ne.s32.totalorder %s94, %s95
      %p107 = scmp.eq.s32.totalorder %s29, 3
      %p108 = por %p106, %p107
      %p110 = scmp.ne.s32.totalorder %s95, %s109
      %p111 = scmp.eq.s32.totalorder %s29, 0
      %p112 = por %p110, %p111
      %s114 = sadd.s32 %s113, 1
      %p117 = scmp.eq.s32.totalorder %s23, 3
      %p118 = scmp.ne.s32.totalorder %s113, %s115
      %p119 = scmp.eq.s32.totalorder %s23, 0
      %p120 = por %p118, %p119
      %p121 = scmp.ne.s32.totalorder %s113, %s115
      %p122 = scmp.eq.s32.totalorder %s28, 3
      %p123 = por %p121, %p122
      %p124 = scmp.ne.s32.totalorder %s115, %s116
      %p125 = scmp.eq.s32.totalorder %s28, 0
      %p126 = por %p124, %p125
      %p127 = scmp.ne.s32.totalorder %s115, %s116
      %p128 = scmp.eq.s32.totalorder %s29, 3
      %p129 = por %p127, %p128
      %p131 = scmp.ne.s32.totalorder %s116, %s130
      %p132 = scmp.eq.s32.totalorder %s29, 0
      %p133 = por %p131, %p132
      %s135 = sadd.s32 %s134, 1
      %p138 = scmp.eq.s32.totalorder %s23, 3
      %p139 = scmp.ne.s32.totalorder %s134, %s136
      %p140 = scmp.eq.s32.totalorder %s23, 0
      %p141 = por %p139, %p140
      %p142 = scmp.ne.s32.totalorder %s134, %s136
      %p143 = scmp.eq.s32.totalorder %s28, 3
      %p144 = por %p142, %p143
      %p145 = scmp.ne.s32.totalorder %s136, %s137
      %p146 = scmp.eq.s32.totalorder %s28, 0
      %p147 = por %p145, %p146
      %p148 = scmp.ne.s32.totalorder %s136, %s137
      %p149 = scmp.eq.s32.totalorder %s29, 3
      %p150 = por %p148, %p149
      %p152 = scmp.ne.s32.totalorder %s137, %s151
      %p153 = scmp.eq.s32.totalorder %s29, 0
      %p154 = por %p152, %p153
      %s155 = ssub.s32 %s30, %s42
      %s156 = ssub.s32 %s31, %s38
      %s157 = sor.u32 %s155, %s156
      %p158 = scmp.eq.s32.totalorder %s157, 0
      %s160 = sadd.s32 %s159, 1
      %s161 = scalar_select %p158, %s159, %s160
      %p164 = pneg %p158
      %p165 = scmp.eq.s32.totalorder %s23, 3
      %p166 = por %p164, %p165
      %p167 = scmp.ne.s32.totalorder %s159, %s162
      %p168 = scmp.eq.s32.totalorder %s23, 0
      %p169 = por %p167, %p168
      %p170 = scmp.ne.s32.totalorder %s159, %s162
      %p171 = scmp.eq.s32.totalorder %s28, 3
      %p172 = por %p170, %p171
      %p173 = scmp.ne.s32.totalorder %s162, %s163
      %p174 = scmp.eq.s32.totalorder %s28, 0
      %p175 = por %p173, %p174
      %p176 = scmp.ne.s32.totalorder %s162, %s163
      %p177 = scmp.eq.s32.totalorder %s29, 3
      %p178 = por %p176, %p177
      %p180 = scmp.ne.s32.totalorder %s163, %s179
      %p181 = scmp.eq.s32.totalorder %s29, 0
      %p182 = por %p180, %p181
      %s183 = ssub.s32 %s30, %s42
      %s184 = ssub.s32 %s31, %s38
      %s185 = sor.u32 %s183, %s184
      %p186 = scmp.eq.s32.totalorder %s185, 0
      %s188 = sadd.s32 %s187, 1
      %s189 = scalar_select %p186, %s187, %s188
      %p192 = pneg %p186
      %p193 = scmp.eq.s32.totalorder %s23, 3
      %p194 = por %p192, %p193
      %p195 = scmp.ne.s32.totalorder %s187, %s190
      %p196 = scmp.eq.s32.totalorder %s23, 0
      %p197 = por %p195, %p196
      %p198 = scmp.ne.s32.totalorder %s187, %s190
      %p199 = scmp.eq.s32.totalorder %s28, 3
      %p200 = por %p198, %p199
      %p201 = scmp.ne.s32.totalorder %s190, %s191
      %p202 = scmp.eq.s32.totalorder %s28, 0
      %p203 = por %p201, %p202
      %p204 = scmp.ne.s32.totalorder %s190, %s191
      %p205 = scmp.eq.s32.totalorder %s29, 3
      %p206 = por %p204, %p205
      %p208 = scmp.ne.s32.totalorder %s191, %s207
      %p209 = scmp.eq.s32.totalorder %s29, 0
      %p210 = por %p208, %p209
      %p211 = scmp.le.s32.totalorder 1, %s23
      %p212 = scmp.lt.s32.totalorder %s23, 5
      %p213 = pnand %p211, %p212
      %p214 = pneg %p213
      // Predicated region
      $region9: #{tpu_custom_call.1} parent=5 // pred_check
        _
      $region10: #{tpu_custom_call.1} parent=5 // pred_check_branch
        %216 = sbr.rel (%p213) target = $region12
      $region11: #{tpu_custom_call.1} parent=5 // pred_region
        %s217 = ssub.s32 %s23, 1
        // Predicated region
        $region13: #{tpu_custom_call.1} parent=11 // pred_check
          %p218 = pneg %p84
        $region14: #{tpu_custom_call.1} parent=11 // pred_check_branch
          %220 = sbr.rel (%p218) target = $region16
        $region15: #{tpu_custom_call.1} parent=11 // pred_region
          %222 = vsyncadd [#allocation6], 0
          %s224 = sshll.u32 %s1, 4
          %s225 = int_to_ptr.hbm [resolvable:$true] %s224
          %s226 = sshll.u32 [#allocation5], 4
          %s227 = int_to_ptr.vmem [resolvable:$true] %s226
          %229 = dma.hbm_to_vmem [thread:$0]  %s225, 16, %s227, [#allocation6]
        $region16: #{tpu_custom_call.1} parent=11 // pred_fallthru
          _
        // Predicated region
        $region17: #{tpu_custom_call.1} parent=11 // pred_check
          %p230 = pneg %p105
        $region18: #{tpu_custom_call.1} parent=11 // pred_check_branch
          %232 = sbr.rel (%p230) target = $region20
        $region19: #{tpu_custom_call.1} parent=11 // pred_region
          _
        $region20: #{tpu_custom_call.1} parent=11 // pred_fallthru
          _
        // Predicated region
        $region21: #{tpu_custom_call.1} parent=11 // pred_check
          %p233 = pneg %p126
        $region22: #{tpu_custom_call.1} parent=11 // pred_check_branch
          %235 = sbr.rel (%p233) target = $region24
        $region23: #{tpu_custom_call.1} parent=11 // pred_region
          %237 = vsyncadd [#allocation6], 0
          %s238 = sshll.u32 %s3, 4
          %s239 = int_to_ptr.hbm [resolvable:$true] %s238
          %s240 = sshll.u32 [#allocation7], 4
          %s241 = int_to_ptr.vmem [resolvable:$true] %s240
          %246 = dma.hbm_to_vmem [thread:$0]  %s239, 256, %s241, [#allocation6], 64, 64, 4
        $region24: #{tpu_custom_call.1} parent=11 // pred_fallthru
          _
        // Predicated region
        $region25: #{tpu_custom_call.1} parent=11 // pred_check
          %p247 = pneg %p147
        $region26: #{tpu_custom_call.1} parent=11 // pred_check_branch
          %249 = sbr.rel (%p247) target = $region28
        $region27: #{tpu_custom_call.1} parent=11 // pred_region
          _
        $region28: #{tpu_custom_call.1} parent=11 // pred_fallthru
          _
      $region12: #{tpu_custom_call.1} parent=5 // pred_fallthru
        _
      %p250 = scmp.lt.s32.totalorder %s23, 4
      // Predicated region
      $region29: #{tpu_custom_call.1} parent=5 // pred_check
        %p251 = pneg %p250
      $region30: #{tpu_custom_call.1} parent=5 // pred_check_branch
        %253 = sbr.rel (%p251) target = $region32
      $region31: #{tpu_custom_call.1} parent=5 // pred_region
        // Predicated region
        $region33: #{tpu_custom_call.1} parent=31 // pred_check
          %p254 = pneg %p57
        $region34: #{tpu_custom_call.1} parent=31 // pred_check_branch
          %256 = sbr.rel (%p254) target = $region36
        $region35: #{tpu_custom_call.1} parent=31 // pred_region
          %s257 = sand.u32 %s47, 1
          %s258 = scalar_lea.sflag [#allocation3], %s257
          %s259 = sand.u32 %s47, 1
          %s260 = smul.addr %s259, 8
          %s261 = scalar_lea.vmem [#allocation2], %s260
          %263 = vsyncadd %s258, 0
          %s264 = smul.addr %s30, 2
          %s265 = sadd.s32 %s31, %s264
          %s266 = smul.addr %s265, 8
          %s267 = scalar_lea.hbm %s0, %s266
          %s269 = sshll.u32 %s267, 4
          %s270 = int_to_ptr.hbm [resolvable:$true] %s269
          %s271 = sshll.u32 %s261, 4
          %s272 = int_to_ptr.vmem [resolvable:$true] %s271
          %274 = dma.hbm_to_vmem [thread:$0]  %s270, 128, %s272, %s258
        $region36: #{tpu_custom_call.1} parent=31 // pred_fallthru
          _
      $region32: #{tpu_custom_call.1} parent=5 // pred_fallthru
        _
      %p275 = scmp.le.s32.totalorder 1, %s23
      %p276 = scmp.lt.s32.totalorder %s23, 5
      %p277 = pnand %p275, %p276
      %p278 = pneg %p277
      // Predicated region
      $region37: #{tpu_custom_call.1} parent=5 // pred_check
        _
      $region38: #{tpu_custom_call.1} parent=5 // pred_check_branch
        %280 = sbr.rel (%p277) target = $region40
      $region39: #{tpu_custom_call.1} parent=5 // pred_region
        %s281 = ssub.s32 %s23, 1
        %s282 = sand.u32 %s50, 1
        %s283 = scalar_lea.sflag [#allocation3], %s282
        %s284 = sand.u32 %s50, 1
        %s285 = smul.addr %s284, 8
        %s286 = scalar_lea.vmem [#allocation2], %s285
        // Predicated region
        $region41: #{tpu_custom_call.1} parent=39 // pred_check
          %p287 = pneg %p63
        $region42: #{tpu_custom_call.1} parent=39 // pred_check_branch
          %289 = sbr.rel (%p287) target = $region44
        $region43: #{tpu_custom_call.1} parent=39 // pred_region
          %291 = dma.done %s283, 128
        $region44: #{tpu_custom_call.1} parent=39 // pred_fallthru
          _
        // Predicated region
        $region45: #{tpu_custom_call.1} parent=39 // pred_check
          %p292 = pneg %p84
        $region46: #{tpu_custom_call.1} parent=39 // pred_check_branch
          %294 = sbr.rel (%p292) target = $region48
        $region47: #{tpu_custom_call.1} parent=39 // pred_region
          %296 = dma.done [#allocation6], 16
        $region48: #{tpu_custom_call.1} parent=39 // pred_fallthru
          _
        // Predicated region
        $region49: #{tpu_custom_call.1} parent=39 // pred_check
          %p297 = pneg %p126
        $region50: #{tpu_custom_call.1} parent=39 // pred_check_branch
          %299 = sbr.rel (%p297) target = $region52
        $region51: #{tpu_custom_call.1} parent=39 // pred_region
          %301 = dma.done [#allocation6], 256
        $region52: #{tpu_custom_call.1} parent=39 // pred_fallthru
          _
        %s302 = sand.u32 %s50, 1
        %s303 = scalar_lea.sflag [#allocation3], %s302
        %s304 = sand.u32 %s50, 1
        %s305 = smul.addr %s304, 8
        %s306 = scalar_lea.vmem [#allocation2], %s305
        %p307 = pneg %p63
        %p308 = pneg %p60
        %p309 = pneg %p84
        %p310 = pneg %p81
        %p311 = pneg %p105
        %p312 = pneg %p102
        %p313 = pneg %p126
        %p314 = pneg %p123
        %p315 = pneg %p147
        %p316 = pneg %p144
        %p317 = pneg %p175
        %p318 = pneg %p172
        %s319 = sand.u32 %s162, 1
        %s320 = scalar_lea.sflag [#allocation4], %s319
        %s321 = sand.u32 %s162, 1
        %s322 = smul.addr %s321, 4
        %s323 = scalar_lea.vmem [#allocation8], %s322
        %p324 = pneg %p203
        %p325 = pneg %p200
        %s326 = sand.u32 %s190, 1
        %s327 = scalar_lea.sflag [#allocation10], %s326
        %s328 = sand.u32 %s190, 1
        %s329 = smul.addr %s328, 4
        %s330 = scalar_lea.vmem [#allocation9], %s329
        %v332 = vld [vmem:[%s286] sm:$0xff]
        %v333 = vld [vmem:[#allocation5] sm:$0x1]
        %v334 = vld [vmem:[%s2] sm:$0x1]
        %vm335 = vcmask 261120
        %v336 = vsel %vm335, %v332, 0.0
        %337 = vadd.xlane.f32.xlu0 %v336
        %v338 = vpop.xlane.xlu0 %337
        %v339 = vrcp.pop 32.0
        %v340 = vmul.f32 32.0, %v339
        %v341 = vsub.f32 1.0, %v340
        %v342 = vmul.f32 %v339, %v341
        %v343 = vadd.f32 %v339, %v342
        %vm344 = vweird.f32 %v339
        %v345 = vsel %vm344, %v339, %v343
        %v346 = vmul.f32 %v338, %v345
        %v347 = vsub.f32 %v332, %v346
        %v348 = vmul.f32 %v347, %v347
        %v349 = vsel %vm335, %v348, 0.0
        %350 = vadd.xlane.f32.xlu0 %v349
        %v351 = vpop.xlane.xlu0 %350
        %v352 = vmul.f32 %v351, %v345
        %v353 = vadd.f32 %v352, 1e-05
        %v354 = vrsqrt.pop %v353
        %v355 = vmul.f32 %v354, %v353
        %v356 = vmul.f32 %v355, %v354
        %v357 = vmul.f32 0.5, %v356
        %v358 = vsub.f32 1.5, %v357
        %v359 = vmul.f32 %v354, %v358
        %vm360 = vweird.f32 %v353
        %vm361 = vweird.f32 %v354
        %vm362 = vmor %vm360, %vm361
        %v363 = vsel %vm362, %v354, %v359
        %v364 = vmul.f32 %v347, %v363
        %v366 = vperm.slane %v333, 0
        %v368 = vmul.f32 %v364, %v366
        %v370 = vperm.slane %v334, 0
        %v372 = vadd.f32 %v368, %v370
        %v373 = vpack.c.bf16 %v372, %v372
        %v374 = vld [vmem:[#allocation7] sm:$0xf]
        %v375 = vld [vmem:[#allocation7 + $0x4] sm:$0xf]
        %v376 = vld [vmem:[#allocation7 + $0x8] sm:$0xf]
        %v377 = vld [vmem:[#allocation7 + $0xc] sm:$0xf]
        %v378 = vld [vmem:[%s4] sm:$0x1]
        %v380 = vperm.slane %v378, 0
        %v386 = vunpack.c.l.b16 %v374
        %v387 = vunpack.c.l.b16 %v375
        %v388 = vunpack.c.l.b16 %v376
        %v389 = vunpack.c.l.b16 %v377
        %v390 = vpack.c.b16 %v387, %v386
        %v391 = vpack.c.b16 %v389, %v388
        %v395 = vsel %vm335, %v373, 0
        %397 = vmatpush.bf16.msra.mxu0 0
        %398 = vmatpush.bf16.msra.mxu0 0
        %399 = vmatpush.bf16.msra.mxu0 0
        %400 = vmatpush.bf16.msra.mxu0 0
        %401 = vmatpush.bf16.msra.mxu0 0
        %402 = vmatpush.bf16.msra.mxu0 0
        %403 = vmatpush.bf16.msra.mxu0 %v391
        %404 = vmatpush.bf16.msra.mxu0 %v390
        %405 = vmatmul.bf16.gmra.mxu0 %v395
        %v406 = vpop.f32.mrf.mxu0
        %v407 = vadd.f32 %v380, %v406
        %v408 = vpop.f32.mrf.mxu0
        %409 = vdwg.mxu0
        %v410 = vpack.c.bf16 %v407, %v407
        %vm411 = vcmask 257024
        %412 = vst.msk [vmem:[%s323] sm:$0xf] %vm411, %v410
        %414 = vrot.lane.b32.xlu0 %v410, 96
        %v415 = vpop.permute.xlu0 %414
        %417 = vst.msk [vmem:[%s330] sm:$0xf] %vm411, %v415
        %s418 = sand.u32 %s162, 1
        %s419 = scalar_lea.sflag [#allocation4], %s418
        %s420 = sand.u32 %s162, 1
        %s421 = smul.addr %s420, 4
        %s422 = scalar_lea.vmem [#allocation8], %s421
        %s423 = sand.u32 %s190, 1
        %s424 = scalar_lea.sflag [#allocation10], %s423
        %s425 = sand.u32 %s190, 1
        %s426 = smul.addr %s425, 4
        %s427 = scalar_lea.vmem [#allocation9], %s426
        // Predicated region
        $region53: #{tpu_custom_call.1} parent=39 // pred_check
          %p428 = pneg %p172
        $region54: #{tpu_custom_call.1} parent=39 // pred_check_branch
          %430 = sbr.rel (%p428) target = $region56
        $region55: #{tpu_custom_call.1} parent=39 // pred_region
          %432 = vsyncadd %s419, 0
          %s433 = smul.addr %s32, 2
          %s434 = sadd.s32 %s33, %s433
          %s435 = smul.addr %s434, 4
          %s436 = scalar_lea.hbm %s5, %s435
          %s438 = sshll.u32 %s422, 4
          %s439 = int_to_ptr.vmem [resolvable:$true] %s438
          %s440 = sshll.u32 %s436, 4
          %s441 = int_to_ptr.hbm [resolvable:$true] %s440
          %443 = dma.vmem_to_hbm [thread:$0]  %s439, 64, %s441, %s419
        $region56: #{tpu_custom_call.1} parent=39 // pred_fallthru
          _
        // Predicated region
        $region57: #{tpu_custom_call.1} parent=39 // pred_check
          %p444 = pneg %p200
        $region58: #{tpu_custom_call.1} parent=39 // pred_check_branch
          %446 = sbr.rel (%p444) target = $region60
        $region59: #{tpu_custom_call.1} parent=39 // pred_region
          %448 = vsyncadd %s424, 0
          %s449 = smul.addr %s32, 2
          %s450 = sadd.s32 %s33, %s449
          %s451 = smul.addr %s450, 4
          %s452 = scalar_lea.hbm %s6, %s451
          %s454 = sshll.u32 %s427, 4
          %s455 = int_to_ptr.vmem [resolvable:$true] %s454
          %s456 = sshll.u32 %s452, 4
          %s457 = int_to_ptr.hbm [resolvable:$true] %s456
          %459 = dma.vmem_to_hbm [thread:$0]  %s455, 64, %s457, %s424
        $region60: #{tpu_custom_call.1} parent=39 // pred_fallthru
          _
      $region40: #{tpu_custom_call.1} parent=5 // pred_fallthru
        _
      %p460 = scmp.le.s32.totalorder 2, %s23
      // Predicated region
      $region61: #{tpu_custom_call.1} parent=5 // pred_check
        %p461 = pneg %p460
      $region62: #{tpu_custom_call.1} parent=5 // pred_check_branch
        %463 = sbr.rel (%p461) target = $region64
      $region63: #{tpu_custom_call.1} parent=5 // pred_region
        %s464 = ssub.s32 %s23, 2
        // Predicated region
        $region65: #{tpu_custom_call.1} parent=63 // pred_check
          %p465 = pneg %p178
        $region66: #{tpu_custom_call.1} parent=63 // pred_check_branch
          %467 = sbr.rel (%p465) target = $region68
        $region67: #{tpu_custom_call.1} parent=63 // pred_region
          %s468 = sand.u32 %s163, 1
          %s469 = scalar_lea.sflag [#allocation4], %s468
          %s470 = sand.u32 %s163, 1
          %s471 = smul.addr %s470, 4
          %s472 = scalar_lea.vmem [#allocation8], %s471
          %474 = dma.done %s469, 64
        $region68: #{tpu_custom_call.1} parent=63 // pred_fallthru
          _
        // Predicated region
        $region69: #{tpu_custom_call.1} parent=63 // pred_check
          %p475 = pneg %p206
        $region70: #{tpu_custom_call.1} parent=63 // pred_check_branch
          %477 = sbr.rel (%p475) target = $region72
        $region71: #{tpu_custom_call.1} parent=63 // pred_region
          %s478 = sand.u32 %s191, 1
          %s479 = scalar_lea.sflag [#allocation10], %s478
          %s480 = sand.u32 %s191, 1
          %s481 = smul.addr %s480, 4
          %s482 = scalar_lea.vmem [#allocation9], %s481
          %484 = dma.done %s479, 64
        $region72: #{tpu_custom_call.1} parent=63 // pred_fallthru
          _
      $region64: #{tpu_custom_call.1} parent=5 // pred_fallthru
        _
    $region6: #{tpu_custom_call.1} parent=1 // loop_footer
      %s27 = sadd.s32 1, %s23
    $region7: #{tpu_custom_call.1} parent=1 // loop_footer_branch
      %22 = sbr.rel target = $region3
    $region8: #{tpu_custom_call.1} parent=1 // loop_exit
      _
    %485 = vsyncpa [#allocation3], 1
    %s486 = scalar_lea.sflag [#allocation3], 1
    %487 = vsyncpa %s486, 1
    %488 = vsyncpa [#allocation6], 1
    %489 = vsyncpa [#allocation4], 1
    %s490 = scalar_lea.sflag [#allocation4], 1
    %491 = vsyncpa %s490, 1
    %492 = vsyncpa [#allocation10], 1
    %s493 = scalar_lea.sflag [#allocation10], 1
    %494 = vsyncpa %s493, 1

</llo_original>
